<compile_context>
chip_gen: v5e
topology: v5e:2x2
jax: 0.10.0
libtpu: 0.0.40
codegen_flags: <defaults>
</compile_context>

<pallas_src>
import jax
import jax.numpy as jnp
from jax.experimental import pallas as pl
from jax.experimental.pallas import tpu as pltpu


def _vmem_capacity_bytes() -> int:
    try:
        return int(pltpu.get_tpu_info().vmem_capacity_bytes)
    except Exception:
        return 64 * 1024 * 1024          # conservative fallback: v7x physical VMEM


_VMEM_CAP = _vmem_capacity_bytes()


def _gate_kernel(x_ref, y_ref, w_ref, b_ref, o_ref):
    # x_ref, y_ref, o_ref : (R, T)  packed channels on sublanes, pixels on lanes
    # w_ref               : (R, R)  (block-diagonal) conv weight, (c_out, c_in)
    # b_ref               : (R, 1)  f32 conv bias, broadcasts over lanes
    x = x_ref[...]
    y = y_ref[...]
    d = x - y                                                     # VPU, input dtype
    z = jnp.dot(w_ref[...], d, preferred_element_type=jnp.float32) + b_ref[...]
    g = jax.nn.sigmoid(z)                                         # f32, EUP
    o_ref[...] = (g * x + y).astype(o_ref.dtype)


@jax.jit
def gate_forward(x, y, weight, bias):
    """x, y: (N, C, H, W).  weight: (C, C, 1, 1).  bias: (C,)."""
    n, c, h, w = x.shape
    hw = h * w
    itemsize = x.dtype.itemsize

    # --- Sublane packing for tiny channel counts ------------------------------
    # (N, C, HW) -> (N//g, g*C, HW) is a free reshape over leading contiguous
    # dims, so g images share one block and fill all 8 f32 sublanes per vreg.
    g = 1
    if c < 8:
        for cand in range(min(max(1, 8 // c), n), 0, -1):
            if n % cand == 0:
                g = cand
                break
    r = g * c
    n_pack = n // g

    x3 = x.reshape(n_pack, r, hw)
    y3 = y.reshape(n_pack, r, hw)

    w2 = weight[:, :, 0, 0].astype(x.dtype)              # (c_out, c_in)
    if g > 1:
        w2 = jnp.kron(jnp.eye(g, dtype=w2.dtype), w2)    # block-diagonal (r, r)
    b2 = jnp.tile(bias.astype(jnp.float32), g).reshape(r, 1)

    # --- Byte-based lane tile, generation-aware VMEM budget -------------------
    vmem_limit = max(32 * 1024 * 1024,
                     min((_VMEM_CAP * 3) // 4, 96 * 1024 * 1024))
    # 3 slabs (x, y, out), double-buffered by the pipeline = 6 live buffers;
    # keep headroom for single-buffered weight/bias + compiler scratch.
    slab_budget = (vmem_limit - 2 * 1024 * 1024) // 6
    max_t = max(128, (slab_budget // max(1, r * itemsize)) // 128 * 128)
    t = min(hw, max_t)
    if t < hw:
        t = max(128, (t // 128) * 128)   # lane-dim blocks must be 128-multiples

    grid = (n_pack, pl.cdiv(hw, t))

    in_bytes = 2 * n * c * hw * itemsize + r * r * itemsize + r * 4
    out_bytes = n * c * hw * itemsize
    cost = pl.CostEstimate(
        flops=2 * n_pack * hw * r * r + 4 * n * c * hw,
        transcendentals=n * c * hw,
        bytes_accessed=in_bytes + out_bytes,
    )

    out_flat = pl.pallas_call(
        _gate_kernel,
        out_shape=jax.ShapeDtypeStruct((n_pack, r, hw), x.dtype),
        grid_spec=pltpu.PrefetchScalarGridSpec(
            num_scalar_prefetch=0,
            grid=grid,
            in_specs=[
                pl.BlockSpec((None, r, t), lambda i, j: (i, 0, j)),   # x slab
                pl.BlockSpec((None, r, t), lambda i, j: (i, 0, j)),   # y slab
                # Constant-index parameters: fetched once, single-buffered.
                pl.BlockSpec((r, r), lambda i, j: (0, 0),
                             pipeline_mode=pl.Buffered(1)),           # W
                pl.BlockSpec((r, 1), lambda i, j: (0, 0),
                             pipeline_mode=pl.Buffered(1)),           # bias
            ],
            out_specs=pl.BlockSpec((None, r, t), lambda i, j: (i, 0, j)),
        ),
        compiler_params=pltpu.CompilerParams(
            # Both grid axes independent -> megacore sharding on v7x,
            # harmless no-op on single-TC v5e/v6e.
            dimension_semantics=("parallel", "parallel"),
            vmem_limit_bytes=vmem_limit,
        ),
        cost_estimate=cost,
    )(x3, y3, w2, b2)

    # Free reshape back: (N//g, g*C, H*W) -> (N, C, H, W).
    return out_flat.reshape(n, c, h, w)


def _reference(x, y, weight, bias):
    d = x - y
    # 1x1 conv on NCHW: out[n, co, h, w] = sum_ci W[co, ci] * d[n, ci, h, w] + b[co]
    z = jnp.einsum("oc,nchw->nohw", weight[:, :, 0, 0], d) + bias[None, :, None, None]
    return jax.nn.sigmoid(z) * x + y


if __name__ == "__main__":
    key = jax.random.PRNGKey(0)
    kx, ky, kw, kb = jax.random.split(key, 4)

    N, C, H, W = 2, 4, 16, 16  # dim = 4
    x = jax.random.normal(kx, (N, C, H, W), dtype=jnp.float32)
    y = jax.random.normal(ky, (N, C, H, W), dtype=jnp.float32)

    # Deterministic Conv2d(dim, dim, 1) parameters (PyTorch-style uniform bound).
    bound = 1.0 / (C ** 0.5)
    weight = jax.random.uniform(kw, (C, C, 1, 1), jnp.float32, -bound, bound)
    bias = jax.random.uniform(kb, (C,), jnp.float32, -bound, bound)

    out = gate_forward(x, y, weight, bias)
    jax.block_until_ready(out)

    ref = _reference(x, y, weight, bias)
    assert out.shape == (N, C, H, W)
    err = float(jnp.max(jnp.abs(out - ref)))
    assert jnp.allclose(out, ref, atol=1e-5, rtol=1e-5), err

    print("KERNEL_OK")
</pallas_src>

<mosaic_0001>
module attributes {stable_mosaic.version = 11 : i64} {
  func.func @_gate_kernel(%arg0: i32, %arg1: i32, %arg2: memref<1x8x256xf32, #tpu.memory_space<vmem>>, %arg3: memref<1x8x256xf32, #tpu.memory_space<vmem>>, %arg4: memref<8x8xf32, #tpu.memory_space<vmem>>, %arg5: memref<8x1xf32, #tpu.memory_space<vmem>>, %arg6: memref<1x8x256xf32, #tpu.memory_space<vmem>>) attributes {dimension_semantics = [#tpu.dimension_semantics<parallel>, #tpu.dimension_semantics<parallel>], iteration_bounds = array<i64: 1, 1>, scalar_prefetch = 0 : i64, scratch_operands = 0 : i64, tpu.core_type = #tpu.core_type<tc>, window_params = [{transform_indices = @transform_0, window_bounds = array<i64: 1, 8, 256>}, {transform_indices = @transform_1, window_bounds = array<i64: 1, 8, 256>}, {pipeline_mode = #tpu.pipeline_mode<synchronous>, transform_indices = @transform_2, window_bounds = array<i64: 8, 8>}, {pipeline_mode = #tpu.pipeline_mode<synchronous>, transform_indices = @transform_3, window_bounds = array<i64: 8, 1>}, {transform_indices = @transform_4, window_bounds = array<i64: 1, 8, 256>}]} {
    %c0 = arith.constant 0 : index
    %c0_0 = arith.constant 0 : index
    %c0_1 = arith.constant 0 : index
    %0 = vector.load %arg2[%c0, %c0_0, %c0_1] : memref<1x8x256xf32, #tpu.memory_space<vmem>>, vector<1x8x256xf32>
    %1 = vector.shape_cast %0 : vector<1x8x256xf32> to vector<8x256xf32>
    %c0_2 = arith.constant 0 : index
    %c0_3 = arith.constant 0 : index
    %c0_4 = arith.constant 0 : index
    %2 = vector.load %arg3[%c0_2, %c0_3, %c0_4] : memref<1x8x256xf32, #tpu.memory_space<vmem>>, vector<1x8x256xf32>
    %3 = vector.shape_cast %2 : vector<1x8x256xf32> to vector<8x256xf32>
    %4 = arith.subf %1, %3 : vector<8x256xf32>
    %c0_5 = arith.constant 0 : index
    %c0_6 = arith.constant 0 : index
    %5 = vector.load %arg4[%c0_5, %c0_6] : memref<8x8xf32, #tpu.memory_space<vmem>>, vector<8x8xf32>
    %cst = arith.constant dense<0.000000e+00> : vector<8x256xf32>
    %6 = tpu.matmul %5, %4, %cst {dimension_numbers = #tpu.dot_dimension_numbers<[1], [0], [0], [1], [0, 0, 1, 1], [], []>} : vector<8x8xf32>, vector<8x256xf32>, vector<8x256xf32> -> vector<8x256xf32>
    %c0_7 = arith.constant 0 : index
    %c0_8 = arith.constant 0 : index
    %7 = vector.load %arg5[%c0_7, %c0_8] : memref<8x1xf32, #tpu.memory_space<vmem>>, vector<8x1xf32>
    %8 = vector.broadcast %7 : vector<8x1xf32> to vector<8x256xf32>
    %9 = arith.addf %6, %8 : vector<8x256xf32>
    %10 = arith.negf %9 : vector<8x256xf32>
    %11 = math.exp %10 : vector<8x256xf32>
    %cst_9 = arith.constant 1.000000e+00 : f32
    %12 = vector.broadcast %cst_9 : f32 to vector<8x256xf32>
    %13 = arith.addf %12, %11 : vector<8x256xf32>
    %14 = arith.divf %12, %13 : vector<8x256xf32>
    %15 = arith.mulf %14, %1 : vector<8x256xf32>
    %16 = arith.addf %15, %3 : vector<8x256xf32>
    %c0_10 = arith.constant 0 : index
    %c0_11 = arith.constant 0 : index
    %c0_12 = arith.constant 0 : index
    %17 = vector.load %arg6[%c0_10, %c0_11, %c0_12] : memref<1x8x256xf32, #tpu.memory_space<vmem>>, vector<1x8x256xf32>
    %18 = vector.shape_cast %17 : vector<1x8x256xf32> to vector<8x256xf32>
    %19 = vector.shape_cast %16 : vector<8x256xf32> to vector<1x8x256xf32>
    tpu.vector_store %arg6[%c0_10, %c0_11, %c0_12], %19 {strides = array<i32>} : memref<1x8x256xf32, #tpu.memory_space<vmem>>, vector<1x8x256xf32>,
    return
  }
  func.func @transform_0(%arg0: i32, %arg1: i32) -> (i32, i32, i32) {
    %c0_i32 = arith.constant 0 : i32
    %c0_i32_0 = arith.constant 0 : i32
    return %arg0, %c0_i32, %arg1 : i32, i32, i32
  }
  func.func @transform_1(%arg0: i32, %arg1: i32) -> (i32, i32, i32) {
    %c0_i32 = arith.constant 0 : i32
    %c0_i32_0 = arith.constant 0 : i32
    return %arg0, %c0_i32, %arg1 : i32, i32, i32
  }
  func.func @transform_2(%arg0: i32, %arg1: i32) -> (i32, i32) {
    %c0_i32 = arith.constant 0 : i32
    %c0_i32_0 = arith.constant 0 : i32
    %c0_i32_1 = arith.constant 0 : i32
    return %c0_i32, %c0_i32_0 : i32, i32
  }
  func.func @transform_3(%arg0: i32, %arg1: i32) -> (i32, i32) {
    %c0_i32 = arith.constant 0 : i32
    %c0_i32_0 = arith.constant 0 : i32
    %c0_i32_1 = arith.constant 0 : i32
    return %c0_i32, %c0_i32_0 : i32, i32
  }
  func.func @transform_4(%arg0: i32, %arg1: i32) -> (i32, i32, i32) {
    %c0_i32 = arith.constant 0 : i32
    %c0_i32_0 = arith.constant 0 : i32
    return %arg0, %c0_i32, %arg1 : i32, i32, i32
  }
}

</mosaic_0001>

<llo_original>
// kernel: tile.8
$region0: #{tile.8}
  #allocation0 [shape = 's32[1]{0}', space=sflag, size = 0x4, scoped, tag = 'scoped memory for tile.8']
  %s0 = inlined_call_operand.vmem [shape: f32[4], index: 0, kind: input, shape index: {}]
  %s1 = inlined_call_operand.vmem [shape: f32[2,4], index: 1, kind: output, shape index: {}]
  // Predicated region
  $region2: #{tile.8} parent=0 // pred_check
    _
  $region3: #{tile.8} parent=0 // pred_check_branch
    %3 = sbr.rel (0) target = $region5
  $region4: #{tile.8} parent=0 // pred_region
    _
  $region5: #{tile.8} parent=0 // pred_fallthru
    _
  %v4 = vld [vmem:[%s0] ss:$0 sm:$0xff]
  %5 = vst [vmem:[%s1] sm:$0x3] %v4

// kernel: tile.0
$region0: #{tile.0}
  %s0 = inlined_call_operand.vmem [shape: f32[2,4], index: 0, kind: input, shape index: {}]
  %s1 = inlined_call_operand.vmem [shape: f32[8,1], index: 1, kind: output, shape index: {}]
  $region1: #{tile.0} parent=0
    #allocation0 [shape = 'u8[4096]{0}', space=vmem, size = 0x1000, scoped, tag = 'scoped mem for input reshape']
    %s3 = ssub.s32 4, 1
    %v4 = vld [vmem:[%s0] sm:%s3]
    %5 = vst [vmem:[#allocation0] sm:%s3] %v4
    %v6 = vld [vmem:[#allocation0] sm:$0x3]
    %vm7 = vcmask 7168
    %8 = vst.msk [vmem:[%s1] ss:$4 sm:$0x3] %vm7, %v6
    %v9 = vld [vmem:[#allocation0] sm:$0x3]
    %10 = vrot.lane.b32.xlu0 %v9, 127
    %v11 = vpop.permute.xlu0 %10
    %vm12 = vcmask 7168
    %s13 = scalar_lea.vmem %s1, 1
    %14 = vst.msk [vmem:[%s13] ss:$4 sm:$0x3] %vm12, %v11
    %v15 = vld [vmem:[#allocation0] sm:$0x3]
    %16 = vrot.lane.b32.xlu0 %v15, 126
    %v17 = vpop.permute.xlu0 %16
    %vm18 = vcmask 7168
    %s19 = scalar_lea.vmem %s1, 2
    %20 = vst.msk [vmem:[%s19] ss:$4 sm:$0x3] %vm18, %v17
    %v21 = vld [vmem:[#allocation0] sm:$0x3]
    %22 = vrot.lane.b32.xlu0 %v21, 125
    %v23 = vpop.permute.xlu0 %22
    %vm24 = vcmask 7168
    %s25 = scalar_lea.vmem %s1, 3
    %26 = vst.msk [vmem:[%s25] ss:$4 sm:$0x3] %vm24, %v23

// kernel: gate_forward.1
$region0: #{gate_forward.1}
  #allocation0 [shape = 'u32[]', space=smem, size = 0x4, offset = 0x4, fixed_abs, tag = 'smem constant byte address 0x4 - core index']
  #allocation1 [shape = 'u32[72,128]{1,0:T(1,128)}', space=vmem, size = 0x9000, scoped, tag = 'internal scratch']
  %s0 = inlined_call_operand.vmem [shape: f32[1,8,256], index: 0, kind: input, shape index: {}]
  %s1 = inlined_call_operand.vmem [shape: f32[1,8,256], index: 1, kind: input, shape index: {}]
  %s2 = inlined_call_operand.vmem [shape: f32[8,8], index: 2, kind: input, shape index: {}]
  %s3 = inlined_call_operand.vmem [shape: f32[8,1], index: 3, kind: input, shape index: {}]
  %s4 = inlined_call_operand.vmem [shape: f32[1,8,256], index: 4, kind: output, shape index: {}]
  %s5 = sld [smem:[#allocation0]]
  $region26: #{gate_forward.1} parent=0
    _
  %s7 = ssub.s32 1, %s5
  %s8 = scalar_select 0, %s7, %s5
  // Predicated region
  $region2: #{gate_forward.1} parent=0 // pred_check
    _
  $region3: #{gate_forward.1} parent=0 // pred_check_branch
    %10 = sbr.rel (0) target = $region5
  $region4: #{gate_forward.1} parent=0 // pred_region
    _
  $region5: #{gate_forward.1} parent=0 // pred_fallthru
    _
  // Predicated region
  $region6: #{gate_forward.1} parent=0 // pred_check
    _
  $region7: #{gate_forward.1} parent=0 // pred_check_branch
    %12 = sbr.rel (0) target = $region9
  $region8: #{gate_forward.1} parent=0 // pred_region
    _
  $region9: #{gate_forward.1} parent=0 // pred_fallthru
    _
  // Predicated region
  $region10: #{gate_forward.1} parent=0 // pred_check
    _
  $region11: #{gate_forward.1} parent=0 // pred_check_branch
    %14 = sbr.rel (0) target = $region13
  $region12: #{gate_forward.1} parent=0 // pred_region
    _
  $region13: #{gate_forward.1} parent=0 // pred_fallthru
    _
  // Predicated region
  $region14: #{gate_forward.1} parent=0 // pred_check
    _
  $region15: #{gate_forward.1} parent=0 // pred_check_branch
    %16 = sbr.rel (0) target = $region17
  $region16: #{gate_forward.1} parent=0 // pred_region
    _
  $region17: #{gate_forward.1} parent=0 // pred_fallthru
    _
  %v17 = vld [vmem:[%s0] sm:$0xff]
  %v18 = vld [vmem:[%s0 + $0x8] sm:$0xff]
  %v19 = vld [vmem:[%s1] sm:$0xff]
  %v20 = vld [vmem:[%s1 + $0x8] sm:$0xff]
  %v21 = vsub.f32 %v17, %v19
  %v22 = vsub.f32 %v18, %v20
  %v23 = vld [vmem:[%s2] sm:$0xff]
  %v24 = vld [vmem:[%s3] sm:$0xff]
  %26 = vset.pattern.permute.xlu0 0
  %27 = vperm.xlu0 %26, %v24
  %v28 = vpop.permute.xlu0 %27
  %vm30 = vcmask 64512
  %v32 = vsel %vm30, %v23, 0
  %34 = vmatpush.msra.mxu0 0.0
  %35 = vmatpush.msra.mxu0 0.0
  %36 = vmatpush.msra.mxu0 0.0
  %37 = vmatpush.msra.mxu0 0.0
  %38 = vmatpush.msra.mxu0 0.0
  %39 = vmatpush.msra.mxu0 0.0
  %40 = vmatpush.msra.mxu0 0.0
  %41 = vmatpush.msra.mxu0 0.0
  %42 = vmatpush.msra.mxu0 0.0
  %43 = vmatpush.msra.mxu0 0.0
  %44 = vmatpush.msra.mxu0 0.0
  %45 = vmatpush.msra.mxu0 0.0
  %46 = vmatpush.msra.mxu0 0.0
  %47 = vmatpush.msra.mxu0 0.0
  %48 = vmatpush.msra.mxu0 0.0
  %49 = vmatpush.msra.mxu0 %v21
  %50 = vmatmul.f32.gmra.mxu0 %v32
  %v51 = vpop.f32.mrf.mxu0
  %v52 = vadd.f32 %v28, %v51
  %53 = vdwg.mxu0
  %54 = vmatpush.msra.mxu0 0.0
  %55 = vmatpush.msra.mxu0 0.0
  %56 = vmatpush.msra.mxu0 0.0
  %57 = vmatpush.msra.mxu0 0.0
  %58 = vmatpush.msra.mxu0 0.0
  %59 = vmatpush.msra.mxu0 0.0
  %60 = vmatpush.msra.mxu0 0.0
  %61 = vmatpush.msra.mxu0 0.0
  %62 = vmatpush.msra.mxu0 0.0
  %63 = vmatpush.msra.mxu0 0.0
  %64 = vmatpush.msra.mxu0 0.0
  %65 = vmatpush.msra.mxu0 0.0
  %66 = vmatpush.msra.mxu0 0.0
  %67 = vmatpush.msra.mxu0 0.0
  %68 = vmatpush.msra.mxu0 0.0
  %69 = vmatpush.msra.mxu0 %v22
  %70 = vmatmul.f32.gmra.mxu0 %v32
  %v71 = vpop.f32.mrf.mxu0
  %v72 = vadd.f32 %v28, %v71
  %73 = vdwg.mxu0
  %v74 = vxor.u32 %v52, 2147483648
  %v75 = vxor.u32 %v72, 2147483648
  %v76 = vmul.f32 %v74, 1.442695
  %v77 = vpow.pop %v76
  %v78 = vmul.f32 %v75, 1.442695
  %v79 = vpow.pop %v78
  %v80 = vadd.f32 %v77, 1.0
  %v81 = vadd.f32 %v79, 1.0
  %v82 = vrcp.pop %v80
  %v83 = vmul.f32 %v80, %v82
  %v84 = vsub.f32 1.0, %v83
  %v85 = vmul.f32 %v82, %v84
  %v86 = vadd.f32 %v82, %v85
  %vm87 = vweird.f32 %v80
  %vm88 = vweird.f32 %v82
  %vm89 = vmor %vm87, %vm88
  %v90 = vsel %vm89, %v82, %v86
  %v91 = vand.u32 2147483647, %v80
  %vm92 = vcmp.eq.f32.partialorder %v91, 8.507059e+37
  %v93 = vand.u32 %v80, 2147483648
  %v94 = vor.u32 1.1754944e-38, %v93
  %v95 = vsel %vm92, %v94, %v90
  %v96 = vmul.f32 1.0, %v95
  %v97 = vrcp.pop %v81
  %v98 = vmul.f32 %v81, %v97
  %v99 = vsub.f32 1.0, %v98
  %v100 = vmul.f32 %v97, %v99
  %v101 = vadd.f32 %v97, %v100
  %vm102 = vweird.f32 %v81
  %vm103 = vweird.f32 %v97
  %vm104 = vmor %vm102, %vm103
  %v105 = vsel %vm104, %v97, %v101
  %v106 = vand.u32 2147483647, %v81
  %vm107 = vcmp.eq.f32.partialorder %v106, 8.507059e+37
  %v108 = vand.u32 %v81, 2147483648
  %v109 = vor.u32 1.1754944e-38, %v108
  %v110 = vsel %vm107, %v109, %v105
  %v111 = vmul.f32 1.0, %v110
  %v112 = vmul.f32 %v96, %v17
  %v113 = vmul.f32 %v111, %v18
  %v114 = vadd.f32 %v112, %v19
  %v115 = vadd.f32 %v113, %v20
  %116 = vst [vmem:[%s4] sm:$0xff] %v114
  %117 = vst [vmem:[%s4 + $0x8] sm:$0xff] %v115
  // Predicated region
  $region18: #{gate_forward.1} parent=0 // pred_check
    _
  $region19: #{gate_forward.1} parent=0 // pred_check_branch
    %119 = sbr.rel (0) target = $region21
  $region20: #{gate_forward.1} parent=0 // pred_region
    _
  $region21: #{gate_forward.1} parent=0 // pred_fallthru
    _
  // Predicated region
  $region22: #{gate_forward.1} parent=0 // pred_check
    _
  $region23: #{gate_forward.1} parent=0 // pred_check_branch
    %121 = sbr.rel (0) target = $region25
  $region24: #{gate_forward.1} parent=0 // pred_region
    _
  $region25: #{gate_forward.1} parent=0 // pred_fallthru
    _

</llo_original>
